<compile_context>
chip_gen: v7x
topology: tpu7x:2x2x1
jax: 0.10.0
libtpu: 0.0.40
codegen_flags: <defaults>
</compile_context>

<pallas_src>
import jax
import jax.numpy as jnp
from jax.experimental import pallas as pl
from jax.experimental.pallas import tpu as pltpu


def _copy_kernel(src_ref, dst_ref):
    # refine_adj = adj  (exact forward semantics: identity on adj)
    dst_ref[...] = src_ref[...]


_MAX_LANE_WIDTH = 4096        # widest lane-dense tile (elements) considered
_TARGET_TILE_BYTES = 2 << 20  # ~2 MiB/tile -> ~8 MiB resident with 2x(in+out) buffers


def _pick_lane_dense_layout(total_elems, itemsize):
    """Factor total_elems into (R, C) with C a multiple of 128, plus row tile TR.

    Returns None if no 128-divisible factorization exists (fallback path used).
    """
    start = min(_MAX_LANE_WIDTH, (total_elems // 128) * 128)
    c = 0
    for cand in range(start, 0, -128):
        if total_elems % cand == 0:
            c = cand
            break
    if c == 0:
        return None
    r = total_elems // c
    # Row tile: ~_TARGET_TILE_BYTES per tile, multiple of 8 (sublane rule)
    # unless it equals the full row extent (full-dim blocks are always legal).
    tr = max(8, (_TARGET_TILE_BYTES // (c * itemsize)) // 8 * 8)
    tr = min(r, tr)
    return r, c, tr


def nofine_graph_learn(semantic_x, adj,
                       low_sim_threshold=0.2, high_sim_threshold=0.8,
                       use_kernel=True):
    """JAX/Pallas equivalent of nofine_GraphLearnModule.forward.

    semantic_x: [B, N, C]  (ignored by the reference module)
    adj:        [B, N, N]
    returns refine_adj == adj, same shape/dtype.
    """
    del semantic_x, low_sim_threshold, high_sim_threshold  # unused in forward

    if not use_kernel:
        # Optimal hot path: forward is a pure identity, so avoid the HBM
        # round-trip copy entirely.
        return adj

    orig_shape = adj.shape
    dtype = adj.dtype
    itemsize = jnp.dtype(dtype).itemsize
    total = 1
    for d in orig_shape:
        total *= d

    layout = _pick_lane_dense_layout(total, itemsize)

    if layout is not None:
        r, c, tr = layout
        adj2d = adj.reshape(r, c)
        spec = pl.BlockSpec((tr, c), lambda i: (i, 0))
        out2d = pl.pallas_call(
            _copy_kernel,
            out_shape=jax.ShapeDtypeStruct((r, c), dtype),
            grid=(pl.cdiv(r, tr),),
            in_specs=[spec],
            out_specs=spec,
            compiler_params=pltpu.CompilerParams(
                dimension_semantics=("parallel",),
            ),
        )(adj2d)
        return out2d.reshape(orig_shape)

    # Fallback (total element count not a multiple of 128): one block per
    # leading-dim slab with full trailing extents, which always satisfies the
    # (8,128)-or-full-dim block rule.
    lead = orig_shape[0]
    blk = (1,) + tuple(orig_shape[1:])
    ndim_rest = len(orig_shape) - 1
    spec = pl.BlockSpec(blk, lambda b: (b,) + (0,) * ndim_rest)
    return pl.pallas_call(
        _copy_kernel,
        out_shape=jax.ShapeDtypeStruct(orig_shape, dtype),
        grid=(lead,),
        in_specs=[spec],
        out_specs=spec,
        compiler_params=pltpu.CompilerParams(
            dimension_semantics=("parallel",),
        ),
    )(adj)


if __name__ == "__main__":
    key = jax.random.PRNGKey(0)
    k1, k2 = jax.random.split(key)

    B, N, C = 2, 16, 32
    semantic_x = jax.random.normal(k1, (B, N, C), dtype=jnp.float32)
    adj = jax.random.uniform(k2, (B, N, N), dtype=jnp.float32)

    refine_adj = nofine_graph_learn(semantic_x, adj)
    refine_adj = jax.block_until_ready(refine_adj)

    # Correctness check against the reference semantics (identity on adj).
    assert refine_adj.shape == adj.shape
    assert refine_adj.dtype == adj.dtype
    assert bool(jnp.array_equal(refine_adj, adj))

    # Zero-copy path must also match.
    fast = jax.block_until_ready(nofine_graph_learn(semantic_x, adj, use_kernel=False))
    assert bool(jnp.array_equal(fast, adj))

    print("KERNEL_OK")
</pallas_src>

<mosaic_0001>
module attributes {stable_mosaic.version = 11 : i64} {
  func.func @_copy_kernel(%arg0: i32, %arg1: memref<1x512xf32, #tpu.memory_space<vmem>>, %arg2: memref<1x512xf32, #tpu.memory_space<vmem>>) attributes {dimension_semantics = [#tpu.dimension_semantics<parallel>], iteration_bounds = array<i64: 1>, scalar_prefetch = 0 : i64, scratch_operands = 0 : i64, tpu.core_type = #tpu.core_type<tc>, window_params = [{transform_indices = @transform_0, window_bounds = array<i64: 1, 512>}, {transform_indices = @transform_1, window_bounds = array<i64: 1, 512>}]} {
    %c0 = arith.constant 0 : index
    %c0_0 = arith.constant 0 : index
    %0 = vector.load %arg1[%c0, %c0_0] : memref<1x512xf32, #tpu.memory_space<vmem>>, vector<1x512xf32>
    %c0_1 = arith.constant 0 : index
    %c0_2 = arith.constant 0 : index
    %1 = vector.load %arg2[%c0_1, %c0_2] : memref<1x512xf32, #tpu.memory_space<vmem>>, vector<1x512xf32>
    tpu.vector_store %arg2[%c0_1, %c0_2], %0 {strides = array<i32>} : memref<1x512xf32, #tpu.memory_space<vmem>>, vector<1x512xf32>,
    return
  }
  func.func @transform_0(%arg0: i32) -> (i32, i32) {
    %c0_i32 = arith.constant 0 : i32
    %c0_i32_0 = arith.constant 0 : i32
    return %arg0, %c0_i32 : i32, i32
  }
  func.func @transform_1(%arg0: i32) -> (i32, i32) {
    %c0_i32 = arith.constant 0 : i32
    %c0_i32_0 = arith.constant 0 : i32
    return %arg0, %c0_i32 : i32, i32
  }
}

</mosaic_0001>

<llo_original>
// kernel: tpu_custom_call.1
$region0: #{tpu_custom_call.1}
  #allocation0 [shape = 'u32[]', space=smem, size = 0x4, offset = 0x4, fixed_abs, tag = 'smem constant byte address 0x4 - core index']
  #allocation1 [shape = 'u32[144,128]{1,0:T(1,128)}', space=vmem, size = 0x12000, scoped, tag = 'internal scratch']
  %s0 = inlined_call_operand.hbm [shape: f32[1,512], index: 0, kind: input, shape index: {}]
  %s1 = inlined_call_operand.hbm [shape: f32[1,512], index: 1, kind: output, shape index: {}]
  %s2 = sld [smem:[#allocation0]]
  $region18: #{tpu_custom_call.1} parent=0
    _
  %s4 = ssub.s32 1, %s2
  %s5 = scalar_select 0, %s4, %s2
  $region1: #{tpu_custom_call.1} parent=0
    #allocation2 [shape = 'u8[2048]{0}', space=vmem, size = 0x800, scoped, tag = 'input window, operand 0, single buffered']
    #allocation3 [shape = 's32[1]{0}', space=sflag, size = 0x4, scoped, tag = 'scoped memory for tpu_custom_call.1']
    #allocation4 [shape = 's32[1]{0}', space=sflag, size = 0x4, scoped, tag = 'scoped memory for tpu_custom_call.1']
    #allocation5 [shape = 'u8[2048]{0}', space=vmem, size = 0x800, scoped, tag = 'output window, operand 0, single buffered']
    %6 = vsyncpa [#allocation3], 0
    %7 = vsyncpa [#allocation4], 0
    // Predicated region
    $region2: #{tpu_custom_call.1} parent=1 // pred_check
      _
    $region3: #{tpu_custom_call.1} parent=1 // pred_check_branch
      %9 = sbr.rel (0) target = $region5
    $region4: #{tpu_custom_call.1} parent=1 // pred_region
      %s11 = ssub.s32 64, 64
      %12 = vsyncadd [#allocation3], %s11
      %s14 = sshll.u32 [#allocation2], 4
      %s15 = int_to_ptr.vmem [resolvable:$true] %s14
      %17 = dma.hbm_to_vmem [thread:$0]  %s0, 64, %s15, [#allocation3]
    $region5: #{tpu_custom_call.1} parent=1 // pred_fallthru
      _
    // Predicated region
    $region6: #{tpu_custom_call.1} parent=1 // pred_check
      _
    $region7: #{tpu_custom_call.1} parent=1 // pred_check_branch
      %19 = sbr.rel (0) target = $region9
    $region8: #{tpu_custom_call.1} parent=1 // pred_region
      %20 = dma.done [#allocation3], 64
    $region9: #{tpu_custom_call.1} parent=1 // pred_fallthru
      _
    %v21 = vld [vmem:[#allocation2] sm:$0xf]
    %v22 = vlaneseq
    %vm23 = vcmp.ge.s32.totalorder %v22, 0
    %vm24 = vcmp.lt.s32.totalorder %v22, 512
    %vm25 = vmand %vm23, %vm24
    %26 = vst.msk [vmem:[#allocation5] sm:$0xf] %vm25, %v21
    // Predicated region
    $region10: #{tpu_custom_call.1} parent=1 // pred_check
      _
    $region11: #{tpu_custom_call.1} parent=1 // pred_check_branch
      %28 = sbr.rel (0) target = $region13
    $region12: #{tpu_custom_call.1} parent=1 // pred_region
      %s30 = ssub.s32 64, 64
      %31 = vsyncadd [#allocation4], %s30
      %s33 = sshll.u32 [#allocation5], 4
      %s34 = int_to_ptr.vmem [resolvable:$true] %s33
      %36 = dma.vmem_to_hbm [thread:$0]  %s34, 64, %s1, [#allocation4]
    $region13: #{tpu_custom_call.1} parent=1 // pred_fallthru
      _
    // Predicated region
    $region14: #{tpu_custom_call.1} parent=1 // pred_check
      _
    $region15: #{tpu_custom_call.1} parent=1 // pred_check_branch
      %38 = sbr.rel (0) target = $region17
    $region16: #{tpu_custom_call.1} parent=1 // pred_region
      %39 = dma.done [#allocation4], 64
    $region17: #{tpu_custom_call.1} parent=1 // pred_fallthru
      _
    %40 = vsyncpa [#allocation3], 1
    %41 = vsyncpa [#allocation4], 1

</llo_original>
